<compile_context>
chip_gen: v5e
topology: v5e:2x2
jax: 0.10.0
libtpu: 0.0.40
codegen_flags: <defaults>
</compile_context>

<pallas_src>
import jax
import jax.numpy as jnp
from jax.experimental import pallas as pl
from jax.experimental.pallas import tpu as pltpu


def _add_kernel(x_ref, b_ref, o_ref):
    # Pure VPU broadcast add. b_ref is either (TR, 1) (per-row bias column,
    # 4D dense-lane path) or (1, TC) (per-lane bias row).
    o_ref[...] = x_ref[...] + b_ref[...]


_TINY_BYTES = 1 << 20  # below ~1 MiB the fused XLA add beats kernel dispatch

_CHIP_PARAMS_CACHE = None


def _chip_params():
    """(target_block_bytes, vmem_limit_bytes) for this chip generation."""
    global _CHIP_PARAMS_CACHE
    if _CHIP_PARAMS_CACHE is None:
        # Defaults safe on every generation (v7x: 64 MiB physical VMEM).
        target, limit = 8 * 1024 * 1024, 48 * 1024 * 1024
        try:
            vmem_cap = pltpu.get_tpu_info().vmem_capacity_bytes
            if vmem_cap > 64 * 1024 * 1024:
                # v5e / v6e: 128 MiB VMEM -> bigger blocks amortize the
                # ~0.35 us per-grid-step overhead further.
                target, limit = 16 * 1024 * 1024, 80 * 1024 * 1024
        except Exception:
            pass
        _CHIP_PARAMS_CACHE = (target, limit)
    return _CHIP_PARAMS_CACHE


def _sublane_multiple(dtype):
    size = jnp.dtype(dtype).itemsize
    if size >= 4:
        return 8
    if size == 2:
        return 16
    return 32


def _pick_tiles(rows, cols, itemsize, target_block_bytes, sub_mult):
    """Largest ~target-sized block; (sub_mult, 128)-aligned unless full-dim.

    Never lets a single block exceed the target, so arrays larger than one
    block always get a >=2-step 'parallel' grid (keeps both v7x TCs busy).
    """
    max_lanes = max(
        128, (target_block_bytes // (itemsize * sub_mult)) // 128 * 128
    )
    tc = cols if cols <= max_lanes else max_lanes            # full dim or x128
    max_tr = max(
        sub_mult,
        (target_block_bytes // (itemsize * tc)) // sub_mult * sub_mult,
    )
    tr = rows if rows <= max_tr else max_tr                  # full dim or xsub
    return tr, tc


def _add_bias_2d(x2, b2):
    """x2: (rows, cols); b2: (rows, 1) row-bias column or (1, cols) lane row."""
    rows, cols = x2.shape
    itemsize = x2.dtype.itemsize
    sub = _sublane_multiple(x2.dtype)
    target_block, vmem_limit = _chip_params()
    tr, tc = _pick_tiles(rows, cols, itemsize, target_block, sub)
    grid = (pl.cdiv(rows, tr), pl.cdiv(cols, tc))

    if b2.shape[0] != 1:                 # per-row bias column (4D dense path)
        b_spec = pl.BlockSpec((tr, 1), lambda i, j: (i, 0))
    else:                                # per-lane bias row
        b_spec = pl.BlockSpec((1, tc), lambda i, j: (0, j))

    return pl.pallas_call(
        _add_kernel,
        out_shape=jax.ShapeDtypeStruct((rows, cols), x2.dtype),
        grid=grid,
        in_specs=[
            pl.BlockSpec((tr, tc), lambda i, j: (i, j)),
            b_spec,
        ],
        out_specs=pl.BlockSpec((tr, tc), lambda i, j: (i, j)),
        compiler_params=pltpu.CompilerParams(
            dimension_semantics=("parallel", "parallel"),
            vmem_limit_bytes=vmem_limit,
        ),
    )(x2, b2)


def add_bias(x, bias, *, force_pallas=False):
    """PyTorch AddBias.forward. x: (N, C) or (N, C, H, W); bias: (C,)."""
    b = bias.astype(x.dtype)   # add in input dtype (see dtype note at top)
    total_bytes = x.size * x.dtype.itemsize

    if x.ndim == 2:
        N, C = x.shape
        if not force_pallas and total_bytes < _TINY_BYTES:
            return x + b.reshape(1, C)          # tiny: let XLA fuse it
        k = pl.cdiv(128, C)
        if C < 128 and N >= k:
            # Fold rows into lanes so stores are lane-dense instead of
            # C-wide masked stores.
            n_main = (N // k) * k
            x_main = x[:n_main].reshape(n_main // k, k * C)
            b_row = jnp.tile(b, k).reshape(1, k * C)
            out_main = _add_bias_2d(x_main, b_row).reshape(n_main, C)
            if n_main == N:
                return out_main
            out_tail = x[n_main:] + b.reshape(1, C)   # < k rows: negligible
            return jnp.concatenate([out_main, out_tail], axis=0)
        return _add_bias_2d(x, b.reshape(1, C))

    N, C, H, W = x.shape
    if not force_pallas and total_bytes < _TINY_BYTES:
        return x + b.reshape(1, C, 1, 1)        # tiny: let XLA fuse it
    hw = H * W
    if hw >= 128 and hw % 128 == 0:
        # Lane dim H*W is already a dense multiple of 128: contiguous reshape
        # (free view), per-row bias column. No transposes, no masked stores.
        x2 = x.reshape(N * C, hw)
        b_col = jnp.tile(b, N).reshape(N * C, 1)   # tiny (N*C elements)
        return _add_bias_2d(x2, b_col).reshape(N, C, H, W)
    # Narrow / ragged spatial dims: fold channels into the lane dim so the
    # output stays lane-dense; bias becomes a per-lane row.
    x2 = x.reshape(N, C * hw)
    b_row = jnp.repeat(b, hw).reshape(1, C * hw)
    return _add_bias_2d(x2, b_row).reshape(N, C, H, W)


if __name__ == "__main__":
    key = jax.random.PRNGKey(0)
    k_bias, k_x4a, k_x4b, k_x2a, k_x2b = jax.random.split(key, 5)

    C = 4
    # Deterministic "parameter" init (PyTorch module stores bias.unsqueeze(1)).
    bias = jax.random.normal(k_bias, (C,), dtype=jnp.float32)

    # 4D case, H*W multiple of 128 -> (N*C, H*W) column-bias path.
    x4a = jax.random.normal(k_x4a, (2, C, 16, 16), dtype=jnp.float32)
    out = jax.block_until_ready(add_bias(x4a, bias, force_pallas=True))
    ref = x4a + bias.reshape(1, C, 1, 1)
    assert out.shape == x4a.shape and out.dtype == x4a.dtype
    assert jnp.allclose(out, ref, atol=1e-6, rtol=1e-6)

    # 4D case, ragged spatial (7x7) -> lane-dense (N, C*H*W) path.
    x4b = jax.random.normal(k_x4b, (2, C, 7, 7), dtype=jnp.float32)
    out = jax.block_until_ready(add_bias(x4b, bias, force_pallas=True))
    ref = x4b + bias.reshape(1, C, 1, 1)
    assert out.shape == x4b.shape and out.dtype == x4b.dtype
    assert jnp.allclose(out, ref, atol=1e-6, rtol=1e-6)

    # 2D case, tiny (2, 4): fold impossible -> direct (1, C) lane-row path.
    x2a = jax.random.normal(k_x2a, (2, C), dtype=jnp.float32)
    out = jax.block_until_ready(add_bias(x2a, bias, force_pallas=True))
    ref = x2a + bias.reshape(1, C)
    assert out.shape == x2a.shape and out.dtype == x2a.dtype
    assert jnp.allclose(out, ref, atol=1e-6, rtol=1e-6)

    # 2D case with row->lane folding (N=70: 64 folded rows + 6-row tail).
    x2b = jax.random.normal(k_x2b, (70, C), dtype=jnp.float32)
    out = jax.block_until_ready(add_bias(x2b, bias, force_pallas=True))
    ref = x2b + bias.reshape(1, C)
    assert out.shape == x2b.shape and out.dtype == x2b.dtype
    assert jnp.allclose(out, ref, atol=1e-6, rtol=1e-6)

    # Default dispatch (tiny-input XLA fast path) must also match.
    out = jax.block_until_ready(add_bias(x4a, bias))
    assert jnp.allclose(out, x4a + bias.reshape(1, C, 1, 1), atol=1e-6, rtol=1e-6)

    print("KERNEL_OK")
</pallas_src>

<mosaic_0001>
module attributes {stable_mosaic.version = 11 : i64} {
  func.func @_add_kernel(%arg0: i32, %arg1: i32, %arg2: memref<8x256xf32, #tpu.memory_space<vmem>>, %arg3: memref<8x1xf32, #tpu.memory_space<vmem>>, %arg4: memref<8x256xf32, #tpu.memory_space<vmem>>) attributes {dimension_semantics = [#tpu.dimension_semantics<parallel>, #tpu.dimension_semantics<parallel>], iteration_bounds = array<i64: 1, 1>, scalar_prefetch = 0 : i64, scratch_operands = 0 : i64, tpu.core_type = #tpu.core_type<tc>, window_params = [{transform_indices = @transform_0, window_bounds = array<i64: 8, 256>}, {transform_indices = @transform_1, window_bounds = array<i64: 8, 1>}, {transform_indices = @transform_2, window_bounds = array<i64: 8, 256>}]} {
    %c0 = arith.constant 0 : index
    %c0_0 = arith.constant 0 : index
    %0 = vector.load %arg2[%c0, %c0_0] : memref<8x256xf32, #tpu.memory_space<vmem>>, vector<8x256xf32>
    %c0_1 = arith.constant 0 : index
    %c0_2 = arith.constant 0 : index
    %1 = vector.load %arg3[%c0_1, %c0_2] : memref<8x1xf32, #tpu.memory_space<vmem>>, vector<8x1xf32>
    %2 = vector.broadcast %1 : vector<8x1xf32> to vector<8x256xf32>
    %3 = arith.addf %0, %2 : vector<8x256xf32>
    %c0_3 = arith.constant 0 : index
    %c0_4 = arith.constant 0 : index
    %4 = vector.load %arg4[%c0_3, %c0_4] : memref<8x256xf32, #tpu.memory_space<vmem>>, vector<8x256xf32>
    tpu.vector_store %arg4[%c0_3, %c0_4], %3 {strides = array<i32>} : memref<8x256xf32, #tpu.memory_space<vmem>>, vector<8x256xf32>,
    return
  }
  func.func @transform_0(%arg0: i32, %arg1: i32) -> (i32, i32) {
    %c0_i32 = arith.constant 0 : i32
    return %arg0, %arg1 : i32, i32
  }
  func.func @transform_1(%arg0: i32, %arg1: i32) -> (i32, i32) {
    %c0_i32 = arith.constant 0 : i32
    %c0_i32_0 = arith.constant 0 : i32
    return %arg0, %c0_i32 : i32, i32
  }
  func.func @transform_2(%arg0: i32, %arg1: i32) -> (i32, i32) {
    %c0_i32 = arith.constant 0 : i32
    return %arg0, %arg1 : i32, i32
  }
}

</mosaic_0001>

<llo_original>
// kernel: tpu_custom_call.1
$region0: #{tpu_custom_call.1}
  #allocation0 [shape = 'u32[]', space=smem, size = 0x4, offset = 0x4, fixed_abs, tag = 'smem constant byte address 0x4 - core index']
  #allocation1 [shape = 'u32[72,128]{1,0:T(1,128)}', space=vmem, size = 0x9000, scoped, tag = 'internal scratch']
  %s0 = inlined_call_operand.hbm [shape: f32[8,256], index: 0, kind: input, shape index: {}]
  %s1 = inlined_call_operand.vmem [shape: f32[8,1], index: 1, kind: input, shape index: {}]
  %s2 = inlined_call_operand.hbm [shape: f32[8,256], index: 2, kind: output, shape index: {}]
  %s3 = sld [smem:[#allocation0]]
  $region22: #{tpu_custom_call.1} parent=0
    _
  %s5 = ssub.s32 1, %s3
  %s6 = scalar_select 0, %s5, %s3
  $region1: #{tpu_custom_call.1} parent=0
    #allocation2 [shape = 'u8[8192]{0}', space=vmem, size = 0x2000, scoped, tag = 'input window, operand 0, single buffered']
    #allocation3 [shape = 's32[1]{0}', space=sflag, size = 0x4, scoped, tag = 'scoped memory for tpu_custom_call.1']
    #allocation4 [shape = 's32[1]{0}', space=sflag, size = 0x4, scoped, tag = 'scoped memory for tpu_custom_call.1']
    #allocation5 [shape = 'u8[8192]{0}', space=vmem, size = 0x2000, scoped, tag = 'output window, operand 0, single buffered']
    %7 = vsyncpa [#allocation3], 0
    %8 = vsyncpa [#allocation4], 0
    // Predicated region
    $region2: #{tpu_custom_call.1} parent=1 // pred_check
      _
    $region3: #{tpu_custom_call.1} parent=1 // pred_check_branch
      %10 = sbr.rel (0) target = $region5
    $region4: #{tpu_custom_call.1} parent=1 // pred_region
      %12 = vsyncadd [#allocation3], 0
      %s14 = sshll.u32 %s0, 4
      %s15 = int_to_ptr.hbm [resolvable:$true] %s14
      %s16 = sshll.u32 [#allocation2], 4
      %s17 = int_to_ptr.vmem [resolvable:$true] %s16
      %19 = dma.hbm_to_vmem [thread:$0]  %s15, 256, %s17, [#allocation3]
    $region5: #{tpu_custom_call.1} parent=1 // pred_fallthru
      _
    // Predicated region
    $region6: #{tpu_custom_call.1} parent=1 // pred_check
      _
    $region7: #{tpu_custom_call.1} parent=1 // pred_check_branch
      %21 = sbr.rel (0) target = $region9
    $region8: #{tpu_custom_call.1} parent=1 // pred_region
      _
    $region9: #{tpu_custom_call.1} parent=1 // pred_fallthru
      _
    // Predicated region
    $region10: #{tpu_custom_call.1} parent=1 // pred_check
      _
    $region11: #{tpu_custom_call.1} parent=1 // pred_check_branch
      %23 = sbr.rel (0) target = $region13
    $region12: #{tpu_custom_call.1} parent=1 // pred_region
      %25 = dma.done [#allocation3], 256
    $region13: #{tpu_custom_call.1} parent=1 // pred_fallthru
      _
    %v26 = vld [vmem:[#allocation2] sm:$0xff]
    %v27 = vld [vmem:[#allocation2 + $0x8] sm:$0xff]
    %v28 = vld [vmem:[%s1] sm:$0xff]
    %30 = vset.pattern.permute.xlu0 0
    %31 = vperm.xlu0 %30, %v28
    %v32 = vpop.permute.xlu0 %31
    %v34 = vadd.f32 %v26, %v32
    %v35 = vadd.f32 %v27, %v32
    %36 = vst [vmem:[#allocation5] sm:$0xff] %v34
    %37 = vst [vmem:[#allocation5 + $0x8] sm:$0xff] %v35
    // Predicated region
    $region14: #{tpu_custom_call.1} parent=1 // pred_check
      _
    $region15: #{tpu_custom_call.1} parent=1 // pred_check_branch
      %39 = sbr.rel (0) target = $region17
    $region16: #{tpu_custom_call.1} parent=1 // pred_region
      %41 = vsyncadd [#allocation4], 0
      %s43 = sshll.u32 [#allocation5], 4
      %s44 = int_to_ptr.vmem [resolvable:$true] %s43
      %s45 = sshll.u32 %s2, 4
      %s46 = int_to_ptr.hbm [resolvable:$true] %s45
      %48 = dma.vmem_to_hbm [thread:$0]  %s44, 256, %s46, [#allocation4]
    $region17: #{tpu_custom_call.1} parent=1 // pred_fallthru
      _
    // Predicated region
    $region18: #{tpu_custom_call.1} parent=1 // pred_check
      _
    $region19: #{tpu_custom_call.1} parent=1 // pred_check_branch
      %50 = sbr.rel (0) target = $region21
    $region20: #{tpu_custom_call.1} parent=1 // pred_region
      %52 = dma.done [#allocation4], 256
    $region21: #{tpu_custom_call.1} parent=1 // pred_fallthru
      _
    %53 = vsyncpa [#allocation3], 1
    %54 = vsyncpa [#allocation4], 1

</llo_original>
